<compile_context>
chip_gen: v7x
topology: tpu7x:2x2x1
jax: 0.10.0
libtpu: 0.0.40
codegen_flags: <defaults>
</compile_context>

<pallas_src>
import functools
import math

import jax
import jax.numpy as jnp
from jax.experimental import pallas as pl
from jax.experimental.pallas import tpu as pltpu


def _actor_sac_fwd_kernel(x_ref, w0_ref, b0_ref, w1_ref, b1_ref, w2_ref, b2_ref,
                          w3_ref, b3_ref, w4_ref, b4_ref, o_ref):
    cdt = w0_ref.dtype          # MXU operand dtype (fp32 or bf16)
    f32 = jnp.float32

    def linear(a_cdt, w_ref, b_ref):
        # MXU matmul with explicit fp32 accumulation; bias add in fp32.
        return (jnp.dot(a_cdt, w_ref[...], preferred_element_type=f32)
                + b_ref[...].astype(f32))

    x = x_ref[...].astype(cdt)

    # net_state: Linear -> ReLU (x3); cast-to-operand-dtype fused into the ReLU.
    h = jnp.maximum(linear(x, w0_ref, b0_ref), 0.0).astype(cdt)
    h = jnp.maximum(linear(h, w1_ref, b1_ref), 0.0).astype(cdt)
    h = jnp.maximum(linear(h, w2_ref, b2_ref), 0.0).astype(cdt)

    # net_a_avg: Linear -> Hardswish -> Linear, then tanh (forward()).
    y = linear(h, w3_ref, b3_ref)                                      # fp32
    y = (y * jnp.clip(y + 3.0, 0.0, 6.0) * (1.0 / 6.0)).astype(cdt)    # Hardswish + cast
    a = linear(y, w4_ref, b4_ref)
    o_ref[...] = jnp.tanh(a).astype(o_ref.dtype)


def _round_up(x, m):
    return -(-x // m) * m


def _pick_batch_tile(B, max_tile=1024):
    """Batch tile: multiple of 8, <= max_tile, and chosen so the grid has >= 2
    steps whenever B >= 16 (so v7x's second TensorCore gets work)."""
    if B <= 8:
        return 8
    half = -(-B // 2)                  # cdiv(B, 2)
    return min(_round_up(half, 8), max(8, _round_up(max_tile, 8)))


def _resident_spec(shape):
    """Full-array block, constant block index -> stays in VMEM across batch steps.
    Single-buffered (never refetched)."""
    idx = lambda i: (0,) * len(shape)
    try:
        return pl.BlockSpec(shape, idx, pipeline_mode=pl.Buffered(1))
    except TypeError:  # older jax without pipeline_mode kwarg
        return pl.BlockSpec(shape, idx)


def actor_sac_forward(state, params, *, max_batch_tile=1024):
    """state: (B, state_dim); params = (w0,b0,w1,b1,w2,b2,w3,b3,w4,b4), W stored (in, out)."""
    w0, b0, w1, b1, w2, b2, w3, b3, w4, b4 = params
    B, state_dim = state.shape
    mid_dim = w0.shape[1]
    action_dim = w4.shape[1]

    tb = _pick_batch_tile(B, max_batch_tile)
    grid = (pl.cdiv(B, tb),)
    B_pad = grid[0] * tb
    if B_pad != B:
        state = jnp.pad(state, ((0, B_pad - B), (0, 0)))   # zero rows -> finite, sliced off

    wbytes = sum(int(p.size) * p.dtype.itemsize for p in params)
    flops = 2 * B_pad * (state_dim * mid_dim + 3 * mid_dim * mid_dim + mid_dim * action_dim)
    bytes_accessed = (B_pad * state_dim * state.dtype.itemsize
                      + B_pad * action_dim * state.dtype.itemsize + wbytes)

    out = pl.pallas_call(
        _actor_sac_fwd_kernel,
        out_shape=jax.ShapeDtypeStruct((B_pad, action_dim), state.dtype),
        grid=grid,
        in_specs=[
            pl.BlockSpec((tb, state_dim), lambda i: (i, 0)),   # batch tile of state
            _resident_spec(w0.shape), _resident_spec(b0.shape),
            _resident_spec(w1.shape), _resident_spec(b1.shape),
            _resident_spec(w2.shape), _resident_spec(b2.shape),
            _resident_spec(w3.shape), _resident_spec(b3.shape),
            _resident_spec(w4.shape), _resident_spec(b4.shape),
        ],
        out_specs=pl.BlockSpec((tb, action_dim), lambda i: (i, 0)),
        compiler_params=pltpu.CompilerParams(
            dimension_semantics=("parallel",),   # batch tiles shard across v7x's 2 TCs
        ),
        cost_estimate=pl.CostEstimate(
            flops=flops,
            transcendentals=B_pad * action_dim,   # tanh
            bytes_accessed=bytes_accessed,
        ),
    )(state, w0, b0, w1, b1, w2, b2, w3, b3, w4, b4)

    return out[:B] if B_pad != B else out


def init_params(key, state_dim, mid_dim, action_dim, dtype=jnp.float32):
    """PyTorch-Linear-like uniform init; weights stored (in, out)."""
    dims = [(state_dim, mid_dim), (mid_dim, mid_dim), (mid_dim, mid_dim),
            (mid_dim, mid_dim), (mid_dim, action_dim)]
    keys = jax.random.split(key, 2 * len(dims))
    params = []
    for li, (fan_in, fan_out) in enumerate(dims):
        bound = 1.0 / math.sqrt(fan_in)
        w = jax.random.uniform(keys[2 * li], (fan_in, fan_out), jnp.float32, -bound, bound)
        b = jax.random.uniform(keys[2 * li + 1], (1, fan_out), jnp.float32, -bound, bound)
        params += [w.astype(dtype), b.astype(dtype)]
    return tuple(params)


def reference_forward(state, params):
    """Pure-JAX fp32 reference mirroring ActorSAC.forward (if_use_dn=False)."""
    w0, b0, w1, b1, w2, b2, w3, b3, w4, b4 = [p.astype(jnp.float32) for p in params]
    h = jnp.maximum(state @ w0 + b0, 0.0)
    h = jnp.maximum(h @ w1 + b1, 0.0)
    h = jnp.maximum(h @ w2 + b2, 0.0)
    y = h @ w3 + b3
    y = y * jnp.clip(y + 3.0, 0.0, 6.0) / 6.0
    return jnp.tanh(y @ w4 + b4)


if __name__ == "__main__":
    state_dim, mid_dim, action_dim = 12, 128, 4
    key = jax.random.PRNGKey(0)
    kx1, kx2, kp = jax.random.split(key, 3)

    params_f32 = init_params(kp, state_dim, mid_dim, action_dim, jnp.float32)
    params_bf16 = tuple(p.astype(jnp.bfloat16) for p in params_f32)

    fwd = jax.jit(functools.partial(actor_sac_forward))

    # Small inference-like batch (grid=(1,), latency bound by design).
    B1 = 8
    s1 = jax.random.normal(kx1, (B1, state_dim), jnp.float32)
    out1 = jax.block_until_ready(fwd(s1, params_f32))
    ref1 = reference_forward(s1, params_f32)
    assert out1.shape == (B1, action_dim), out1.shape
    assert jnp.allclose(out1, ref1, atol=1e-5, rtol=1e-5), "fp32 mismatch vs reference (B=8)"

    # Non-multiple batch: exercises cdiv grid + wrapper-side padding + >=2 grid steps.
    B2 = 50
    s2 = jax.random.normal(kx2, (B2, state_dim), jnp.float32)
    out2 = jax.block_until_ready(fwd(s2, params_f32))
    ref2 = reference_forward(s2, params_f32)
    assert out2.shape == (B2, action_dim), out2.shape
    assert jnp.allclose(out2, ref2, atol=1e-5, rtol=1e-5), "fp32 mismatch vs reference (B=50)"

    # bf16 weights: native MXU operand path, fp32 accumulation + fp32 epilogues kept,
    # so only bf16 rounding (params + streamed activations) loosens the tolerance.
    out_bf = jax.block_until_ready(fwd(s2, params_bf16))
    ref_bf = reference_forward(s2, params_bf16)   # fp32 math on bf16-rounded params
    assert jnp.allclose(out_bf, ref_bf, atol=3e-2, rtol=3e-2), "bf16 mismatch vs reference"

    print("KERNEL_OK")
</pallas_src>

<mosaic_0001>
module attributes {stable_mosaic.version = 11 : i64} {
  func.func @_actor_sac_fwd_kernel(%arg0: i32, %arg1: memref<8x12xf32, #tpu.memory_space<vmem>>, %arg2: memref<12x128xf32, #tpu.memory_space<vmem>>, %arg3: memref<1x128xf32, #tpu.memory_space<vmem>>, %arg4: memref<128x128xf32, #tpu.memory_space<vmem>>, %arg5: memref<1x128xf32, #tpu.memory_space<vmem>>, %arg6: memref<128x128xf32, #tpu.memory_space<vmem>>, %arg7: memref<1x128xf32, #tpu.memory_space<vmem>>, %arg8: memref<128x128xf32, #tpu.memory_space<vmem>>, %arg9: memref<1x128xf32, #tpu.memory_space<vmem>>, %arg10: memref<128x4xf32, #tpu.memory_space<vmem>>, %arg11: memref<1x4xf32, #tpu.memory_space<vmem>>, %arg12: memref<8x4xf32, #tpu.memory_space<vmem>>) attributes {dimension_semantics = [#tpu.dimension_semantics<parallel>], iteration_bounds = array<i64: 1>, scalar_prefetch = 0 : i64, scratch_operands = 0 : i64, tpu.core_type = #tpu.core_type<tc>, window_params = [{transform_indices = @transform_0, window_bounds = array<i64: 8, 12>}, {pipeline_mode = #tpu.pipeline_mode<synchronous>, transform_indices = @transform_1, window_bounds = array<i64: 12, 128>}, {pipeline_mode = #tpu.pipeline_mode<synchronous>, transform_indices = @transform_2, window_bounds = array<i64: 1, 128>}, {pipeline_mode = #tpu.pipeline_mode<synchronous>, transform_indices = @transform_3, window_bounds = array<i64: 128, 128>}, {pipeline_mode = #tpu.pipeline_mode<synchronous>, transform_indices = @transform_4, window_bounds = array<i64: 1, 128>}, {pipeline_mode = #tpu.pipeline_mode<synchronous>, transform_indices = @transform_5, window_bounds = array<i64: 128, 128>}, {pipeline_mode = #tpu.pipeline_mode<synchronous>, transform_indices = @transform_6, window_bounds = array<i64: 1, 128>}, {pipeline_mode = #tpu.pipeline_mode<synchronous>, transform_indices = @transform_7, window_bounds = array<i64: 128, 128>}, {pipeline_mode = #tpu.pipeline_mode<synchronous>, transform_indices = @transform_8, window_bounds = array<i64: 1, 128>}, {pipeline_mode = #tpu.pipeline_mode<synchronous>, transform_indices = @transform_9, window_bounds = array<i64: 128, 4>}, {pipeline_mode = #tpu.pipeline_mode<synchronous>, transform_indices = @transform_10, window_bounds = array<i64: 1, 4>}, {transform_indices = @transform_11, window_bounds = array<i64: 8, 4>}]} {
    %c0 = arith.constant 0 : index
    %c0_0 = arith.constant 0 : index
    %0 = vector.load %arg1[%c0, %c0_0] : memref<8x12xf32, #tpu.memory_space<vmem>>, vector<8x12xf32>
    %c0_1 = arith.constant 0 : index
    %c0_2 = arith.constant 0 : index
    %1 = vector.load %arg2[%c0_1, %c0_2] : memref<12x128xf32, #tpu.memory_space<vmem>>, vector<12x128xf32>
    %cst = arith.constant dense<0.000000e+00> : vector<8x128xf32>
    %2 = tpu.matmul %0, %1, %cst {dimension_numbers = #tpu.dot_dimension_numbers<[1], [0], [0], [1], [0, 0, 1, 1], [], []>} : vector<8x12xf32>, vector<12x128xf32>, vector<8x128xf32> -> vector<8x128xf32>
    %c0_3 = arith.constant 0 : index
    %c0_4 = arith.constant 0 : index
    %3 = vector.load %arg3[%c0_3, %c0_4] : memref<1x128xf32, #tpu.memory_space<vmem>>, vector<1x128xf32>
    %4 = vector.broadcast %3 : vector<1x128xf32> to vector<8x128xf32>
    %5 = arith.addf %2, %4 : vector<8x128xf32>
    %cst_5 = arith.constant 0.000000e+00 : f32
    %6 = vector.broadcast %cst_5 : f32 to vector<8x128xf32>
    %7 = arith.maximumf %5, %6 : vector<8x128xf32>
    %c0_6 = arith.constant 0 : index
    %c0_7 = arith.constant 0 : index
    %8 = vector.load %arg4[%c0_6, %c0_7] : memref<128x128xf32, #tpu.memory_space<vmem>>, vector<128x128xf32>
    %cst_8 = arith.constant dense<0.000000e+00> : vector<8x128xf32>
    %9 = tpu.matmul %7, %8, %cst_8 {dimension_numbers = #tpu.dot_dimension_numbers<[1], [0], [0], [1], [0, 0, 1, 1], [], []>} : vector<8x128xf32>, vector<128x128xf32>, vector<8x128xf32> -> vector<8x128xf32>
    %c0_9 = arith.constant 0 : index
    %c0_10 = arith.constant 0 : index
    %10 = vector.load %arg5[%c0_9, %c0_10] : memref<1x128xf32, #tpu.memory_space<vmem>>, vector<1x128xf32>
    %11 = vector.broadcast %10 : vector<1x128xf32> to vector<8x128xf32>
    %12 = arith.addf %9, %11 : vector<8x128xf32>
    %cst_11 = arith.constant 0.000000e+00 : f32
    %13 = vector.broadcast %cst_11 : f32 to vector<8x128xf32>
    %14 = arith.maximumf %12, %13 : vector<8x128xf32>
    %c0_12 = arith.constant 0 : index
    %c0_13 = arith.constant 0 : index
    %15 = vector.load %arg6[%c0_12, %c0_13] : memref<128x128xf32, #tpu.memory_space<vmem>>, vector<128x128xf32>
    %cst_14 = arith.constant dense<0.000000e+00> : vector<8x128xf32>
    %16 = tpu.matmul %14, %15, %cst_14 {dimension_numbers = #tpu.dot_dimension_numbers<[1], [0], [0], [1], [0, 0, 1, 1], [], []>} : vector<8x128xf32>, vector<128x128xf32>, vector<8x128xf32> -> vector<8x128xf32>
    %c0_15 = arith.constant 0 : index
    %c0_16 = arith.constant 0 : index
    %17 = vector.load %arg7[%c0_15, %c0_16] : memref<1x128xf32, #tpu.memory_space<vmem>>, vector<1x128xf32>
    %18 = vector.broadcast %17 : vector<1x128xf32> to vector<8x128xf32>
    %19 = arith.addf %16, %18 : vector<8x128xf32>
    %cst_17 = arith.constant 0.000000e+00 : f32
    %20 = vector.broadcast %cst_17 : f32 to vector<8x128xf32>
    %21 = arith.maximumf %19, %20 : vector<8x128xf32>
    %c0_18 = arith.constant 0 : index
    %c0_19 = arith.constant 0 : index
    %22 = vector.load %arg8[%c0_18, %c0_19] : memref<128x128xf32, #tpu.memory_space<vmem>>, vector<128x128xf32>
    %cst_20 = arith.constant dense<0.000000e+00> : vector<8x128xf32>
    %23 = tpu.matmul %21, %22, %cst_20 {dimension_numbers = #tpu.dot_dimension_numbers<[1], [0], [0], [1], [0, 0, 1, 1], [], []>} : vector<8x128xf32>, vector<128x128xf32>, vector<8x128xf32> -> vector<8x128xf32>
    %c0_21 = arith.constant 0 : index
    %c0_22 = arith.constant 0 : index
    %24 = vector.load %arg9[%c0_21, %c0_22] : memref<1x128xf32, #tpu.memory_space<vmem>>, vector<1x128xf32>
    %25 = vector.broadcast %24 : vector<1x128xf32> to vector<8x128xf32>
    %26 = arith.addf %23, %25 : vector<8x128xf32>
    %cst_23 = arith.constant 3.000000e+00 : f32
    %27 = vector.broadcast %cst_23 : f32 to vector<8x128xf32>
    %28 = arith.addf %26, %27 : vector<8x128xf32>
    %cst_24 = arith.constant 0.000000e+00 : f32
    %cst_25 = arith.constant 6.000000e+00 : f32
    %29 = vector.broadcast %cst_24 : f32 to vector<8x128xf32>
    %30 = arith.maximumf %29, %28 : vector<8x128xf32>
    %31 = vector.broadcast %cst_25 : f32 to vector<8x128xf32>
    %32 = arith.minimumf %31, %30 : vector<8x128xf32>
    %33 = arith.mulf %26, %32 : vector<8x128xf32>
    %cst_26 = arith.constant 0.166666672 : f32
    %34 = vector.broadcast %cst_26 : f32 to vector<8x128xf32>
    %35 = arith.mulf %33, %34 : vector<8x128xf32>
    %c0_27 = arith.constant 0 : index
    %c0_28 = arith.constant 0 : index
    %36 = vector.load %arg10[%c0_27, %c0_28] : memref<128x4xf32, #tpu.memory_space<vmem>>, vector<128x4xf32>
    %cst_29 = arith.constant dense<0.000000e+00> : vector<8x4xf32>
    %37 = tpu.matmul %35, %36, %cst_29 {dimension_numbers = #tpu.dot_dimension_numbers<[1], [0], [0], [1], [0, 0, 1, 1], [], []>} : vector<8x128xf32>, vector<128x4xf32>, vector<8x4xf32> -> vector<8x4xf32>
    %c0_30 = arith.constant 0 : index
    %c0_31 = arith.constant 0 : index
    %38 = vector.load %arg11[%c0_30, %c0_31] : memref<1x4xf32, #tpu.memory_space<vmem>>, vector<1x4xf32>
    %39 = vector.broadcast %38 : vector<1x4xf32> to vector<8x4xf32>
    %40 = arith.addf %37, %39 : vector<8x4xf32>
    %41 = math.tanh %40 : vector<8x4xf32>
    %c0_32 = arith.constant 0 : index
    %c0_33 = arith.constant 0 : index
    %42 = vector.load %arg12[%c0_32, %c0_33] : memref<8x4xf32, #tpu.memory_space<vmem>>, vector<8x4xf32>
    tpu.vector_store %arg12[%c0_32, %c0_33], %41 {strides = array<i32>} : memref<8x4xf32, #tpu.memory_space<vmem>>, vector<8x4xf32>,
    return
  }
  func.func @transform_0(%arg0: i32) -> (i32, i32) {
    %c0_i32 = arith.constant 0 : i32
    %c0_i32_0 = arith.constant 0 : i32
    return %arg0, %c0_i32 : i32, i32
  }
  func.func @transform_1(%arg0: i32) -> (i32, i32) {
    %c0_i32 = arith.constant 0 : i32
    %c0_i32_0 = arith.constant 0 : i32
    %c0_i32_1 = arith.constant 0 : i32
    return %c0_i32, %c0_i32_0 : i32, i32
  }
  func.func @transform_2(%arg0: i32) -> (i32, i32) {
    %c0_i32 = arith.constant 0 : i32
    %c0_i32_0 = arith.constant 0 : i32
    %c0_i32_1 = arith.constant 0 : i32
    return %c0_i32, %c0_i32_0 : i32, i32
  }
  func.func @transform_3(%arg0: i32) -> (i32, i32) {
    %c0_i32 = arith.constant 0 : i32
    %c0_i32_0 = arith.constant 0 : i32
    %c0_i32_1 = arith.constant 0 : i32
    return %c0_i32, %c0_i32_0 : i32, i32
  }
  func.func @transform_4(%arg0: i32) -> (i32, i32) {
    %c0_i32 = arith.constant 0 : i32
    %c0_i32_0 = arith.constant 0 : i32
    %c0_i32_1 = arith.constant 0 : i32
    return %c0_i32, %c0_i32_0 : i32, i32
  }
  func.func @transform_5(%arg0: i32) -> (i32, i32) {
    %c0_i32 = arith.constant 0 : i32
    %c0_i32_0 = arith.constant 0 : i32
    %c0_i32_1 = arith.constant 0 : i32
    return %c0_i32, %c0_i32_0 : i32, i32
  }
  func.func @transform_6(%arg0: i32) -> (i32, i32) {
    %c0_i32 = arith.constant 0 : i32
    %c0_i32_0 = arith.constant 0 : i32
    %c0_i32_1 = arith.constant 0 : i32
    return %c0_i32, %c0_i32_0 : i32, i32
  }
  func.func @transform_7(%arg0: i32) -> (i32, i32) {
    %c0_i32 = arith.constant 0 : i32
    %c0_i32_0 = arith.constant 0 : i32
    %c0_i32_1 = arith.constant 0 : i32
    return %c0_i32, %c0_i32_0 : i32, i32
  }
  func.func @transform_8(%arg0: i32) -> (i32, i32) {
    %c0_i32 = arith.constant 0 : i32
    %c0_i32_0 = arith.constant 0 : i32
    %c0_i32_1 = arith.constant 0 : i32
    return %c0_i32, %c0_i32_0 : i32, i32
  }
  func.func @transform_9(%arg0: i32) -> (i32, i32) {
    %c0_i32 = arith.constant 0 : i32
    %c0_i32_0 = arith.constant 0 : i32
    %c0_i32_1 = arith.constant 0 : i32
    return %c0_i32, %c0_i32_0 : i32, i32
  }
  func.func @transform_10(%arg0: i32) -> (i32, i32) {
    %c0_i32 = arith.constant 0 : i32
    %c0_i32_0 = arith.constant 0 : i32
    %c0_i32_1 = arith.constant 0 : i32
    return %c0_i32, %c0_i32_0 : i32, i32
  }
  func.func @transform_11(%arg0: i32) -> (i32, i32) {
    %c0_i32 = arith.constant 0 : i32
    %c0_i32_0 = arith.constant 0 : i32
    return %arg0, %c0_i32 : i32, i32
  }
}

</mosaic_0001>

<llo_original>
// kernel: actor_sac_forward.1
$region0: #{actor_sac_forward.1}
  #allocation0 [shape = 'u32[]', space=smem, size = 0x4, offset = 0x4, fixed_abs, tag = 'smem constant byte address 0x4 - core index']
  #allocation1 [shape = 'u32[144,128]{1,0:T(1,128)}', space=vmem, size = 0x12000, scoped, tag = 'internal scratch']
  %s0 = inlined_call_operand.vmem [shape: f32[8,12], index: 0, kind: input, shape index: {}]
  %s1 = inlined_call_operand.hbm [shape: f32[12,128], index: 1, kind: input, shape index: {}]
  %s2 = inlined_call_operand.vmem [shape: f32[1,128], index: 2, kind: input, shape index: {}]
  %s3 = inlined_call_operand.vmem [shape: f32[128,128], index: 3, kind: input, shape index: {}]
  %s4 = inlined_call_operand.vmem [shape: f32[1,128], index: 4, kind: input, shape index: {}]
  %s5 = inlined_call_operand.hbm [shape: f32[128,128], index: 5, kind: input, shape index: {}]
  %s6 = inlined_call_operand.vmem [shape: f32[1,128], index: 6, kind: input, shape index: {}]
  %s7 = inlined_call_operand.hbm [shape: f32[128,128], index: 7, kind: input, shape index: {}]
  %s8 = inlined_call_operand.vmem [shape: f32[1,128], index: 8, kind: input, shape index: {}]
  %s9 = inlined_call_operand.vmem [shape: f32[128,4], index: 9, kind: input, shape index: {}]
  %s10 = inlined_call_operand.vmem [shape: f32[1,4], index: 10, kind: input, shape index: {}]
  %s11 = inlined_call_operand.vmem [shape: f32[8,4], index: 11, kind: output, shape index: {}]
  %s12 = sld [smem:[#allocation0]]
  $region66: #{actor_sac_forward.1} parent=0
    _
  %s14 = ssub.s32 1, %s12
  %s15 = scalar_select 0, %s14, %s12
  $region1: #{actor_sac_forward.1} parent=0
    #allocation2 [shape = 'u8[8192]{0}', space=vmem, size = 0x2000, scoped, tag = 'input window, operand 1, single buffered']
    #allocation3 [shape = 's32[1]{0}', space=sflag, size = 0x4, scoped, tag = 'scoped memory for actor_sac_forward.1']
    #allocation4 [shape = 'u8[65536]{0}', space=vmem, size = 0x10000, scoped, tag = 'input window, operand 5, single buffered']
    #allocation5 [shape = 's32[1]{0}', space=sflag, size = 0x4, scoped, tag = 'scoped memory for actor_sac_forward.1']
    #allocation6 [shape = 'u8[65536]{0}', space=vmem, size = 0x10000, scoped, tag = 'input window, operand 7, single buffered']
    %16 = vsyncpa [#allocation3], 0
    %17 = vsyncpa [#allocation5], 0
    // Predicated region
    $region2: #{actor_sac_forward.1} parent=1 // pred_check
      _
    $region3: #{actor_sac_forward.1} parent=1 // pred_check_branch
      %19 = sbr.rel (0) target = $region5
    $region4: #{actor_sac_forward.1} parent=1 // pred_region
      _
    $region5: #{actor_sac_forward.1} parent=1 // pred_fallthru
      _
    // Predicated region
    $region6: #{actor_sac_forward.1} parent=1 // pred_check
      _
    $region7: #{actor_sac_forward.1} parent=1 // pred_check_branch
      %21 = sbr.rel (0) target = $region9
    $region8: #{actor_sac_forward.1} parent=1 // pred_region
      %s23 = ssub.s32 256, 256
      %24 = vsyncadd [#allocation3], %s23
      %s25 = sshll.u32 [#allocation2], 4
      %s26 = int_to_ptr.vmem [resolvable:$true] %s25
      %31 = dma.hbm_to_vmem [thread:$0]  %s1, 256, %s26, [#allocation3], 128, 128, 8
    $region9: #{actor_sac_forward.1} parent=1 // pred_fallthru
      _
    // Predicated region
    $region10: #{actor_sac_forward.1} parent=1 // pred_check
      _
    $region11: #{actor_sac_forward.1} parent=1 // pred_check_branch
      %33 = sbr.rel (0) target = $region13
    $region12: #{actor_sac_forward.1} parent=1 // pred_region
      _
    $region13: #{actor_sac_forward.1} parent=1 // pred_fallthru
      _
    // Predicated region
    $region14: #{actor_sac_forward.1} parent=1 // pred_check
      _
    $region15: #{actor_sac_forward.1} parent=1 // pred_check_branch
      %35 = sbr.rel (0) target = $region17
    $region16: #{actor_sac_forward.1} parent=1 // pred_region
      _
    $region17: #{actor_sac_forward.1} parent=1 // pred_fallthru
      _
    // Predicated region
    $region18: #{actor_sac_forward.1} parent=1 // pred_check
      _
    $region19: #{actor_sac_forward.1} parent=1 // pred_check_branch
      %37 = sbr.rel (0) target = $region21
    $region20: #{actor_sac_forward.1} parent=1 // pred_region
      _
    $region21: #{actor_sac_forward.1} parent=1 // pred_fallthru
      _
    // Predicated region
    $region22: #{actor_sac_forward.1} parent=1 // pred_check
      _
    $region23: #{actor_sac_forward.1} parent=1 // pred_check_branch
      %39 = sbr.rel (0) target = $region25
    $region24: #{actor_sac_forward.1} parent=1 // pred_region
      %s41 = ssub.s32 2048, 2048
      %42 = vsyncadd [#allocation5], %s41
      %s43 = sshll.u32 [#allocation4], 4
      %s44 = int_to_ptr.vmem [resolvable:$true] %s43
      %49 = dma.hbm_to_vmem [thread:$0]  %s5, 2048, %s44, [#allocation5], 128, 128, 8
    $region25: #{actor_sac_forward.1} parent=1 // pred_fallthru
      _
    // Predicated region
    $region26: #{actor_sac_forward.1} parent=1 // pred_check
      _
    $region27: #{actor_sac_forward.1} parent=1 // pred_check_branch
      %51 = sbr.rel (0) target = $region29
    $region28: #{actor_sac_forward.1} parent=1 // pred_region
      _
    $region29: #{actor_sac_forward.1} parent=1 // pred_fallthru
      _
    // Predicated region
    $region30: #{actor_sac_forward.1} parent=1 // pred_check
      _
    $region31: #{actor_sac_forward.1} parent=1 // pred_check_branch
      %53 = sbr.rel (0) target = $region33
    $region32: #{actor_sac_forward.1} parent=1 // pred_region
      %s55 = ssub.s32 2048, 2048
      %56 = vsyncadd [#allocation5], %s55
      %s57 = sshll.u32 [#allocation6], 4
      %s58 = int_to_ptr.vmem [resolvable:$true] %s57
      %63 = dma.hbm_to_vmem [thread:$0]  %s7, 2048, %s58, [#allocation5], 128, 128, 8
    $region33: #{actor_sac_forward.1} parent=1 // pred_fallthru
      _
    // Predicated region
    $region34: #{actor_sac_forward.1} parent=1 // pred_check
      _
    $region35: #{actor_sac_forward.1} parent=1 // pred_check_branch
      %65 = sbr.rel (0) target = $region37
    $region36: #{actor_sac_forward.1} parent=1 // pred_region
      _
    $region37: #{actor_sac_forward.1} parent=1 // pred_fallthru
      _
    // Predicated region
    $region38: #{actor_sac_forward.1} parent=1 // pred_check
      _
    $region39: #{actor_sac_forward.1} parent=1 // pred_check_branch
      %67 = sbr.rel (0) target = $region41
    $region40: #{actor_sac_forward.1} parent=1 // pred_region
      _
    $region41: #{actor_sac_forward.1} parent=1 // pred_fallthru
      _
    // Predicated region
    $region42: #{actor_sac_forward.1} parent=1 // pred_check
      _
    $region43: #{actor_sac_forward.1} parent=1 // pred_check_branch
      %69 = sbr.rel (0) target = $region45
    $region44: #{actor_sac_forward.1} parent=1 // pred_region
      _
    $region45: #{actor_sac_forward.1} parent=1 // pred_fallthru
      _
    // Predicated region
    $region46: #{actor_sac_forward.1} parent=1 // pred_check
      _
    $region47: #{actor_sac_forward.1} parent=1 // pred_check_branch
      %71 = sbr.rel (0) target = $region49
    $region48: #{actor_sac_forward.1} parent=1 // pred_region
      %72 = dma.done [#allocation3], 256
    $region49: #{actor_sac_forward.1} parent=1 // pred_fallthru
      _
    // Predicated region
    $region50: #{actor_sac_forward.1} parent=1 // pred_check
      _
    $region51: #{actor_sac_forward.1} parent=1 // pred_check_branch
      %74 = sbr.rel (0) target = $region53
    $region52: #{actor_sac_forward.1} parent=1 // pred_region
      %75 = dma.done [#allocation5], 2048
    $region53: #{actor_sac_forward.1} parent=1 // pred_fallthru
      _
    // Predicated region
    $region54: #{actor_sac_forward.1} parent=1 // pred_check
      _
    $region55: #{actor_sac_forward.1} parent=1 // pred_check_branch
      %77 = sbr.rel (0) target = $region57
    $region56: #{actor_sac_forward.1} parent=1 // pred_region
      %78 = dma.done [#allocation5], 2048
    $region57: #{actor_sac_forward.1} parent=1 // pred_fallthru
      _
    %v79 = vld [vmem:[%s0] sm:$0xff]
    %v80 = vld [vmem:[#allocation2] sm:$0xff]
    %v81 = vld [vmem:[#allocation2 + $0x8] sm:$0xf]
    %v82 = vld [vmem:[%s2] sm:$0x1]
    %v84 = vlaneseq
    %v85 = vshrl.u32 %v84, 7
    %v86 = vsub.s32 0, %v85
    %v87 = vrot.slane %v82, %v86
    %vm89 = vcmask 97280
    %v91 = vsel %vm89, %v79, 0
    %vm93 = vcmask 1043456
    %v95 = vsel %vm93, %v81, 0
    %97 = vmatprep.subr.mxu0 0.0
    %98 = vmatpush1.msra.mxu0 %v80
    %99 = vmatprep.subr.mxu0 0.0
    %100 = vmatpush1.msra.mxu0 %v95
    %101 = vmatprep.subr.mxu0 0.0
    %102 = vmatpush1.msra.mxu0 0.0
    %103 = vmatprep.subr.mxu0 0.0
    %104 = vmatpush1.msra.mxu0 0.0
    %105 = vmatprep.subr.mxu0 0.0
    %106 = vmatpush1.msra.mxu0 0.0
    %107 = vmatprep.subr.mxu0 0.0
    %108 = vmatpush1.msra.mxu0 0.0
    %109 = vmatprep.subr.mxu0 0.0
    %110 = vmatpush1.msra.mxu0 0.0
    %111 = vmatprep.subr.mxu0 0.0
    %112 = vmatpush1.msra.mxu0 0.0
    %113 = vmatprep.subr.mxu0 0.0
    %114 = vmatpush1.msra.mxu0 0.0
    %115 = vmatprep.subr.mxu0 0.0
    %116 = vmatpush1.msra.mxu0 0.0
    %117 = vmatprep.subr.mxu0 0.0
    %118 = vmatpush1.msra.mxu0 0.0
    %119 = vmatprep.subr.mxu0 0.0
    %120 = vmatpush1.msra.mxu0 0.0
    %121 = vmatprep.subr.mxu0 0.0
    %122 = vmatpush1.msra.mxu0 0.0
    %123 = vmatprep.subr.mxu0 0.0
    %124 = vmatpush1.msra.mxu0 0.0
    %125 = vmatprep.subr.mxu0 0.0
    %126 = vmatpush1.msra.mxu0 0.0
    %127 = vmatprep.subr.mxu0 0.0
    %128 = vmatpush1.msra.mxu0 0.0
    %129 = vmatprep.subr.mxu0 0.0
    %130 = vmatpush1.msra.mxu0 0.0
    %131 = vmatprep.subr.mxu0 0.0
    %132 = vmatpush1.msra.mxu0 0.0
    %133 = vmatprep.subr.mxu0 0.0
    %134 = vmatpush1.msra.mxu0 0.0
    %135 = vmatprep.subr.mxu0 0.0
    %136 = vmatpush1.msra.mxu0 0.0
    %137 = vmatprep.subr.mxu0 0.0
    %138 = vmatpush1.msra.mxu0 0.0
    %139 = vmatprep.subr.mxu0 0.0
    %140 = vmatpush1.msra.mxu0 0.0
    %141 = vmatprep.subr.mxu0 0.0
    %142 = vmatpush1.msra.mxu0 0.0
    %143 = vmatprep.subr.mxu0 0.0
    %144 = vmatpush1.msra.mxu0 0.0
    %145 = vmatprep.subr.mxu0 0.0
    %146 = vmatpush1.msra.mxu0 0.0
    %147 = vmatprep.subr.mxu0 0.0
    %148 = vmatpush1.msra.mxu0 0.0
    %149 = vmatprep.subr.mxu0 0.0
    %150 = vmatpush1.msra.mxu0 0.0
    %151 = vmatprep.subr.mxu0 0.0
    %152 = vmatpush1.msra.mxu0 0.0
    %153 = vmatprep.subr.mxu0 0.0
    %154 = vmatpush1.msra.mxu0 0.0
    %155 = vmatprep.subr.mxu0 0.0
    %156 = vmatpush1.msra.mxu0 0.0
    %157 = vmatprep.subr.mxu0 0.0
    %158 = vmatpush1.msra.mxu0 0.0
    %159 = vmatprep.subr.mxu0 0.0
    %160 = vmatpush1.msra.mxu0 0.0
    %161 = vmatprep.mubr.f32.mxu0 0.0
    %162 = vmatmul.mubr.f32.gmra.mrb[0].mxu0 %v91
    %v163 = vpop.f32.mrb[0].mxu0
    %v164 = vadd.f32 %v87, %v163
    %v165 = vpop.f32.mrb[0].mxu0
    %166 = vdwg.mxu0
    %v167 = vmax.f32 %v164, 0.0
    %v168 = vld [vmem:[%s3] sm:$0xff]
    %v169 = vld [vmem:[%s3 + $0x8] sm:$0xff]
    %v170 = vld [vmem:[%s3 + $0x10] sm:$0xff]
    %v171 = vld [vmem:[%s3 + $0x18] sm:$0xff]
    %v172 = vld [vmem:[%s3 + $0x20] sm:$0xff]
    %v173 = vld [vmem:[%s3 + $0x28] sm:$0xff]
    %v174 = vld [vmem:[%s3 + $0x30] sm:$0xff]
    %v175 = vld [vmem:[%s3 + $0x38] sm:$0xff]
    %v176 = vld [vmem:[%s3 + $0x40] sm:$0xff]
    %v177 = vld [vmem:[%s3 + $0x48] sm:$0xff]
    %v178 = vld [vmem:[%s3 + $0x50] sm:$0xff]
    %v179 = vld [vmem:[%s3 + $0x58] sm:$0xff]
    %v180 = vld [vmem:[%s3 + $0x60] sm:$0xff]
    %v181 = vld [vmem:[%s3 + $0x68] sm:$0xff]
    %v182 = vld [vmem:[%s3 + $0x70] sm:$0xff]
    %v183 = vld [vmem:[%s3 + $0x78] sm:$0xff]
    %v184 = vld [vmem:[%s4] sm:$0x1]
    %v186 = vlaneseq
    %v187 = vshrl.u32 %v186, 7
    %v188 = vsub.s32 0, %v187
    %v189 = vrot.slane %v184, %v188
    %191 = vmatprep.subr.mxu0 0.0
    %192 = vmatpush1.msra.mxu0 %v168
    %193 = vmatprep.subr.mxu0 0.0
    %194 = vmatpush1.msra.mxu0 %v169
    %195 = vmatprep.subr.mxu0 0.0
    %196 = vmatpush1.msra.mxu0 %v170
    %197 = vmatprep.subr.mxu0 0.0
    %198 = vmatpush1.msra.mxu0 %v171
    %199 = vmatprep.subr.mxu0 0.0
    %200 = vmatpush1.msra.mxu0 %v172
    %201 = vmatprep.subr.mxu0 0.0
    %202 = vmatpush1.msra.mxu0 %v173
    %203 = vmatprep.subr.mxu0 0.0
    %204 = vmatpush1.msra.mxu0 %v174
    %205 = vmatprep.subr.mxu0 0.0
    %206 = vmatpush1.msra.mxu0 %v175
    %207 = vmatprep.subr.mxu0 0.0
    %208 = vmatpush1.msra.mxu0 %v176
    %209 = vmatprep.subr.mxu0 0.0
    %210 = vmatpush1.msra.mxu0 %v177
    %211 = vmatprep.subr.mxu0 0.0
    %212 = vmatpush1.msra.mxu0 %v178
    %213 = vmatprep.subr.mxu0 0.0
    %214 = vmatpush1.msra.mxu0 %v179
    %215 = vmatprep.subr.mxu0 0.0
    %216 = vmatpush1.msra.mxu0 %v180
    %217 = vmatprep.subr.mxu0 0.0
    %218 = vmatpush1.msra.mxu0 %v181
    %219 = vmatprep.subr.mxu0 0.0
    %220 = vmatpush1.msra.mxu0 %v182
    %221 = vmatprep.subr.mxu0 0.0
    %222 = vmatpush1.msra.mxu0 %v183
    %223 = vmatprep.subr.mxu0 0.0
    %224 = vmatpush1.msra.mxu0 0.0
    %225 = vmatprep.subr.mxu0 0.0
    %226 = vmatpush1.msra.mxu0 0.0
    %227 = vmatprep.subr.mxu0 0.0
    %228 = vmatpush1.msra.mxu0 0.0
    %229 = vmatprep.subr.mxu0 0.0
    %230 = vmatpush1.msra.mxu0 0.0
    %231 = vmatprep.subr.mxu0 0.0
    %232 = vmatpush1.msra.mxu0 0.0
    %233 = vmatprep.subr.mxu0 0.0
    %234 = vmatpush1.msra.mxu0 0.0
    %235 = vmatprep.subr.mxu0 0.0
    %236 = vmatpush1.msra.mxu0 0.0
    %237 = vmatprep.subr.mxu0 0.0
    %238 = vmatpush1.msra.mxu0 0.0
    %239 = vmatprep.subr.mxu0 0.0
    %240 = vmatpush1.msra.mxu0 0.0
    %241 = vmatprep.subr.mxu0 0.0
    %242 = vmatpush1.msra.mxu0 0.0
    %243 = vmatprep.subr.mxu0 0.0
    %244 = vmatpush1.msra.mxu0 0.0
    %245 = vmatprep.subr.mxu0 0.0
    %246 = vmatpush1.msra.mxu0 0.0
    %247 = vmatprep.subr.mxu0 0.0
    %248 = vmatpush1.msra.mxu0 0.0
    %249 = vmatprep.subr.mxu0 0.0
    %250 = vmatpush1.msra.mxu0 0.0
    %251 = vmatprep.subr.mxu0 0.0
    %252 = vmatpush1.msra.mxu0 0.0
    %253 = vmatprep.subr.mxu0 0.0
    %254 = vmatpush1.msra.mxu0 0.0
    %255 = vmatprep.mubr.f32.mxu0 0.0
    %256 = vmatmul.mubr.f32.gmra.mrb[0].mxu0 %v167
    %v257 = vpop.f32.mrb[0].mxu0
    %v258 = vadd.f32 %v189, %v257
    %v259 = vpop.f32.mrb[0].mxu0
    %260 = vdwg.mxu0
    %v261 = vmax.f32 %v258, 0.0
    %v262 = vld [vmem:[#allocation4] sm:$0xff]
    %v263 = vld [vmem:[#allocation4 + $0x8] sm:$0xff]
    %v264 = vld [vmem:[#allocation4 + $0x10] sm:$0xff]
    %v265 = vld [vmem:[#allocation4 + $0x18] sm:$0xff]
    %v266 = vld [vmem:[#allocation4 + $0x20] sm:$0xff]
    %v267 = vld [vmem:[#allocation4 + $0x28] sm:$0xff]
    %v268 = vld [vmem:[#allocation4 + $0x30] sm:$0xff]
    %v269 = vld [vmem:[#allocation4 + $0x38] sm:$0xff]
    %v270 = vld [vmem:[#allocation4 + $0x40] sm:$0xff]
    %v271 = vld [vmem:[#allocation4 + $0x48] sm:$0xff]
    %v272 = vld [vmem:[#allocation4 + $0x50] sm:$0xff]
    %v273 = vld [vmem:[#allocation4 + $0x58] sm:$0xff]
    %v274 = vld [vmem:[#allocation4 + $0x60] sm:$0xff]
    %v275 = vld [vmem:[#allocation4 + $0x68] sm:$0xff]
    %v276 = vld [vmem:[#allocation4 + $0x70] sm:$0xff]
    %v277 = vld [vmem:[#allocation4 + $0x78] sm:$0xff]
    %v278 = vld [vmem:[%s6] sm:$0x1]
    %v280 = vlaneseq
    %v281 = vshrl.u32 %v280, 7
    %v282 = vsub.s32 0, %v281
    %v283 = vrot.slane %v278, %v282
    %285 = vmatprep.subr.mxu0 0.0
    %286 = vmatpush1.msra.mxu0 %v262
    %287 = vmatprep.subr.mxu0 0.0
    %288 = vmatpush1.msra.mxu0 %v263
    %289 = vmatprep.subr.mxu0 0.0
    %290 = vmatpush1.msra.mxu0 %v264
    %291 = vmatprep.subr.mxu0 0.0
    %292 = vmatpush1.msra.mxu0 %v265
    %293 = vmatprep.subr.mxu0 0.0
    %294 = vmatpush1.msra.mxu0 %v266
    %295 = vmatprep.subr.mxu0 0.0
    %296 = vmatpush1.msra.mxu0 %v267
    %297 = vmatprep.subr.mxu0 0.0
    %298 = vmatpush1.msra.mxu0 %v268
    %299 = vmatprep.subr.mxu0 0.0
    %300 = vmatpush1.msra.mxu0 %v269
    %301 = vmatprep.subr.mxu0 0.0
    %302 = vmatpush1.msra.mxu0 %v270
    %303 = vmatprep.subr.mxu0 0.0
    %304 = vmatpush1.msra.mxu0 %v271
    %305 = vmatprep.subr.mxu0 0.0
    %306 = vmatpush1.msra.mxu0 %v272
    %307 = vmatprep.subr.mxu0 0.0
    %308 = vmatpush1.msra.mxu0 %v273
    %309 = vmatprep.subr.mxu0 0.0
    %310 = vmatpush1.msra.mxu0 %v274
    %311 = vmatprep.subr.mxu0 0.0
    %312 = vmatpush1.msra.mxu0 %v275
    %313 = vmatprep.subr.mxu0 0.0
    %314 = vmatpush1.msra.mxu0 %v276
    %315 = vmatprep.subr.mxu0 0.0
    %316 = vmatpush1.msra.mxu0 %v277
    %317 = vmatprep.subr.mxu0 0.0
    %318 = vmatpush1.msra.mxu0 0.0
    %319 = vmatprep.subr.mxu0 0.0
    %320 = vmatpush1.msra.mxu0 0.0
    %321 = vmatprep.subr.mxu0 0.0
    %322 = vmatpush1.msra.mxu0 0.0
    %323 = vmatprep.subr.mxu0 0.0
    %324 = vmatpush1.msra.mxu0 0.0
    %325 = vmatprep.subr.mxu0 0.0
    %326 = vmatpush1.msra.mxu0 0.0
    %327 = vmatprep.subr.mxu0 0.0
    %328 = vmatpush1.msra.mxu0 0.0
    %329 = vmatprep.subr.mxu0 0.0
    %330 = vmatpush1.msra.mxu0 0.0
    %331 = vmatprep.subr.mxu0 0.0
    %332 = vmatpush1.msra.mxu0 0.0
    %333 = vmatprep.subr.mxu0 0.0
    %334 = vmatpush1.msra.mxu0 0.0
    %335 = vmatprep.subr.mxu0 0.0
    %336 = vmatpush1.msra.mxu0 0.0
    %337 = vmatprep.subr.mxu0 0.0
    %338 = vmatpush1.msra.mxu0 0.0
    %339 = vmatprep.subr.mxu0 0.0
    %340 = vmatpush1.msra.mxu0 0.0
    %341 = vmatprep.subr.mxu0 0.0
    %342 = vmatpush1.msra.mxu0 0.0
    %343 = vmatprep.subr.mxu0 0.0
    %344 = vmatpush1.msra.mxu0 0.0
    %345 = vmatprep.subr.mxu0 0.0
    %346 = vmatpush1.msra.mxu0 0.0
    %347 = vmatprep.subr.mxu0 0.0
    %348 = vmatpush1.msra.mxu0 0.0
    %349 = vmatprep.mubr.f32.mxu0 0.0
    %350 = vmatmul.mubr.f32.gmra.mrb[0].mxu0 %v261
    %v351 = vpop.f32.mrb[0].mxu0
    %v352 = vadd.f32 %v283, %v351
    %v353 = vpop.f32.mrb[0].mxu0
    %354 = vdwg.mxu0
    %v355 = vmax.f32 %v352, 0.0
    %v356 = vld [vmem:[#allocation6] sm:$0xff]
    %v357 = vld [vmem:[#allocation6 + $0x8] sm:$0xff]
    %v358 = vld [vmem:[#allocation6 + $0x10] sm:$0xff]
    %v359 = vld [vmem:[#allocation6 + $0x18] sm:$0xff]
    %v360 = vld [vmem:[#allocation6 + $0x20] sm:$0xff]
    %v361 = vld [vmem:[#allocation6 + $0x28] sm:$0xff]
    %v362 = vld [vmem:[#allocation6 + $0x30] sm:$0xff]
    %v363 = vld [vmem:[#allocation6 + $0x38] sm:$0xff]
    %v364 = vld [vmem:[#allocation6 + $0x40] sm:$0xff]
    %v365 = vld [vmem:[#allocation6 + $0x48] sm:$0xff]
    %v366 = vld [vmem:[#allocation6 + $0x50] sm:$0xff]
    %v367 = vld [vmem:[#allocation6 + $0x58] sm:$0xff]
    %v368 = vld [vmem:[#allocation6 + $0x60] sm:$0xff]
    %v369 = vld [vmem:[#allocation6 + $0x68] sm:$0xff]
    %v370 = vld [vmem:[#allocation6 + $0x70] sm:$0xff]
    %v371 = vld [vmem:[#allocation6 + $0x78] sm:$0xff]
    %v372 = vld [vmem:[%s8] sm:$0x1]
    %v374 = vlaneseq
    %v375 = vshrl.u32 %v374, 7
    %v376 = vsub.s32 0, %v375
    %v377 = vrot.slane %v372, %v376
    %379 = vmatprep.subr.mxu0 0.0
    %380 = vmatpush1.msra.mxu0 %v356
    %381 = vmatprep.subr.mxu0 0.0
    %382 = vmatpush1.msra.mxu0 %v357
    %383 = vmatprep.subr.mxu0 0.0
    %384 = vmatpush1.msra.mxu0 %v358
    %385 = vmatprep.subr.mxu0 0.0
    %386 = vmatpush1.msra.mxu0 %v359
    %387 = vmatprep.subr.mxu0 0.0
    %388 = vmatpush1.msra.mxu0 %v360
    %389 = vmatprep.subr.mxu0 0.0
    %390 = vmatpush1.msra.mxu0 %v361
    %391 = vmatprep.subr.mxu0 0.0
    %392 = vmatpush1.msra.mxu0 %v362
    %393 = vmatprep.subr.mxu0 0.0
    %394 = vmatpush1.msra.mxu0 %v363
    %395 = vmatprep.subr.mxu0 0.0
    %396 = vmatpush1.msra.mxu0 %v364
    %397 = vmatprep.subr.mxu0 0.0
    %398 = vmatpush1.msra.mxu0 %v365
    %399 = vmatprep.subr.mxu0 0.0
    %400 = vmatpush1.msra.mxu0 %v366
    %401 = vmatprep.subr.mxu0 0.0
    %402 = vmatpush1.msra.mxu0 %v367
    %403 = vmatprep.subr.mxu0 0.0
    %404 = vmatpush1.msra.mxu0 %v368
    %405 = vmatprep.subr.mxu0 0.0
    %406 = vmatpush1.msra.mxu0 %v369
    %407 = vmatprep.subr.mxu0 0.0
    %408 = vmatpush1.msra.mxu0 %v370
    %409 = vmatprep.subr.mxu0 0.0
    %410 = vmatpush1.msra.mxu0 %v371
    %411 = vmatprep.subr.mxu0 0.0
    %412 = vmatpush1.msra.mxu0 0.0
    %413 = vmatprep.subr.mxu0 0.0
    %414 = vmatpush1.msra.mxu0 0.0
    %415 = vmatprep.subr.mxu0 0.0
    %416 = vmatpush1.msra.mxu0 0.0
    %417 = vmatprep.subr.mxu0 0.0
    %418 = vmatpush1.msra.mxu0 0.0
    %419 = vmatprep.subr.mxu0 0.0
    %420 = vmatpush1.msra.mxu0 0.0
    %421 = vmatprep.subr.mxu0 0.0
    %422 = vmatpush1.msra.mxu0 0.0
    %423 = vmatprep.subr.mxu0 0.0
    %424 = vmatpush1.msra.mxu0 0.0
    %425 = vmatprep.subr.mxu0 0.0
    %426 = vmatpush1.msra.mxu0 0.0
    %427 = vmatprep.subr.mxu0 0.0
    %428 = vmatpush1.msra.mxu0 0.0
    %429 = vmatprep.subr.mxu0 0.0
    %430 = vmatpush1.msra.mxu0 0.0
    %431 = vmatprep.subr.mxu0 0.0
    %432 = vmatpush1.msra.mxu0 0.0
    %433 = vmatprep.subr.mxu0 0.0
    %434 = vmatpush1.msra.mxu0 0.0
    %435 = vmatprep.subr.mxu0 0.0
    %436 = vmatpush1.msra.mxu0 0.0
    %437 = vmatprep.subr.mxu0 0.0
    %438 = vmatpush1.msra.mxu0 0.0
    %439 = vmatprep.subr.mxu0 0.0
    %440 = vmatpush1.msra.mxu0 0.0
    %441 = vmatprep.subr.mxu0 0.0
    %442 = vmatpush1.msra.mxu0 0.0
    %443 = vmatprep.mubr.f32.mxu0 0.0
    %444 = vmatmul.mubr.f32.gmra.mrb[0].mxu0 %v355
    %v445 = vpop.f32.mrb[0].mxu0
    %v446 = vadd.f32 %v377, %v445
    %v447 = vpop.f32.mrb[0].mxu0
    %448 = vdwg.mxu0
    %v449 = vadd.f32 %v446, 3.0
    %v450 = vmax.f32 %v449, 0.0
    %v451 = vmin.f32 %v450, 6.0
    %v452 = vmul.f32 %v446, %v451
    %v453 = vmul.f32 %v452, 0.16666667
    %v454 = vld [vmem:[%s9] sm:$0xff]
    %v455 = vld [vmem:[%s9 + $0x8] sm:$0xff]
    %v456 = vld [vmem:[%s9 + $0x10] sm:$0xff]
    %v457 = vld [vmem:[%s9 + $0x18] sm:$0xff]
    %v458 = vld [vmem:[%s9 + $0x20] sm:$0xff]
    %v459 = vld [vmem:[%s9 + $0x28] sm:$0xff]
    %v460 = vld [vmem:[%s9 + $0x30] sm:$0xff]
    %v461 = vld [vmem:[%s9 + $0x38] sm:$0xff]
    %v462 = vld [vmem:[%s9 + $0x40] sm:$0xff]
    %v463 = vld [vmem:[%s9 + $0x48] sm:$0xff]
    %v464 = vld [vmem:[%s9 + $0x50] sm:$0xff]
    %v465 = vld [vmem:[%s9 + $0x58] sm:$0xff]
    %v466 = vld [vmem:[%s9 + $0x60] sm:$0xff]
    %v467 = vld [vmem:[%s9 + $0x68] sm:$0xff]
    %v468 = vld [vmem:[%s9 + $0x70] sm:$0xff]
    %v469 = vld [vmem:[%s9 + $0x78] sm:$0xff]
    %v470 = vld [vmem:[%s10] sm:$0x1]
    %v472 = vlaneseq
    %v473 = vshrl.u32 %v472, 7
    %v474 = vsub.s32 0, %v473
    %v475 = vrot.slane %v470, %v474
    %477 = vmatprep.subr.mxu0 0.0
    %478 = vmatpush1.msra.mxu0 %v454
    %479 = vmatprep.subr.mxu0 0.0
    %480 = vmatpush1.msra.mxu0 %v455
    %481 = vmatprep.subr.mxu0 0.0
    %482 = vmatpush1.msra.mxu0 %v456
    %483 = vmatprep.subr.mxu0 0.0
    %484 = vmatpush1.msra.mxu0 %v457
    %485 = vmatprep.subr.mxu0 0.0
    %486 = vmatpush1.msra.mxu0 %v458
    %487 = vmatprep.subr.mxu0 0.0
    %488 = vmatpush1.msra.mxu0 %v459
    %489 = vmatprep.subr.mxu0 0.0
    %490 = vmatpush1.msra.mxu0 %v460
    %491 = vmatprep.subr.mxu0 0.0
    %492 = vmatpush1.msra.mxu0 %v461
    %493 = vmatprep.subr.mxu0 0.0
    %494 = vmatpush1.msra.mxu0 %v462
    %495 = vmatprep.subr.mxu0 0.0
    %496 = vmatpush1.msra.mxu0 %v463
    %497 = vmatprep.subr.mxu0 0.0
    %498 = vmatpush1.msra.mxu0 %v464
    %499 = vmatprep.subr.mxu0 0.0
    %500 = vmatpush1.msra.mxu0 %v465
    %501 = vmatprep.subr.mxu0 0.0
    %502 = vmatpush1.msra.mxu0 %v466
    %503 = vmatprep.subr.mxu0 0.0
    %504 = vmatpush1.msra.mxu0 %v467
    %505 = vmatprep.subr.mxu0 0.0
    %506 = vmatpush1.msra.mxu0 %v468
    %507 = vmatprep.subr.mxu0 0.0
    %508 = vmatpush1.msra.mxu0 %v469
    %509 = vmatprep.subr.mxu0 0.0
    %510 = vmatpush1.msra.mxu0 0.0
    %511 = vmatprep.subr.mxu0 0.0
    %512 = vmatpush1.msra.mxu0 0.0
    %513 = vmatprep.subr.mxu0 0.0
    %514 = vmatpush1.msra.mxu0 0.0
    %515 = vmatprep.subr.mxu0 0.0
    %516 = vmatpush1.msra.mxu0 0.0
    %517 = vmatprep.subr.mxu0 0.0
    %518 = vmatpush1.msra.mxu0 0.0
    %519 = vmatprep.subr.mxu0 0.0
    %520 = vmatpush1.msra.mxu0 0.0
    %521 = vmatprep.subr.mxu0 0.0
    %522 = vmatpush1.msra.mxu0 0.0
    %523 = vmatprep.subr.mxu0 0.0
    %524 = vmatpush1.msra.mxu0 0.0
    %525 = vmatprep.subr.mxu0 0.0
    %526 = vmatpush1.msra.mxu0 0.0
    %527 = vmatprep.subr.mxu0 0.0
    %528 = vmatpush1.msra.mxu0 0.0
    %529 = vmatprep.subr.mxu0 0.0
    %530 = vmatpush1.msra.mxu0 0.0
    %531 = vmatprep.subr.mxu0 0.0
    %532 = vmatpush1.msra.mxu0 0.0
    %533 = vmatprep.subr.mxu0 0.0
    %534 = vmatpush1.msra.mxu0 0.0
    %535 = vmatprep.subr.mxu0 0.0
    %536 = vmatpush1.msra.mxu0 0.0
    %537 = vmatprep.subr.mxu0 0.0
    %538 = vmatpush1.msra.mxu0 0.0
    %539 = vmatprep.subr.mxu0 0.0
    %540 = vmatpush1.msra.mxu0 0.0
    %541 = vmatprep.mubr.f32.mxu0 0.0
    %542 = vmatmul.mubr.f32.gmra.mrb[0].mxu0 %v453
    %v543 = vpop.f32.mrb[0].mxu0
    %v544 = vadd.f32 %v475, %v543
    %v545 = vpop.f32.mrb[0].mxu0
    %546 = vdwg.mxu0
    %v547 = vtanh.pop %v544
    %vm548 = vcmask 31744
    %549 = vst.msk [vmem:[%s11] sm:$0xff] %vm548, %v547
    // Predicated region
    $region58: #{actor_sac_forward.1} parent=1 // pred_check
      _
    $region59: #{actor_sac_forward.1} parent=1 // pred_check_branch
      %551 = sbr.rel (0) target = $region61
    $region60: #{actor_sac_forward.1} parent=1 // pred_region
      _
    $region61: #{actor_sac_forward.1} parent=1 // pred_fallthru
      _
    // Predicated region
    $region62: #{actor_sac_forward.1} parent=1 // pred_check
      _
    $region63: #{actor_sac_forward.1} parent=1 // pred_check_branch
      %553 = sbr.rel (0) target = $region65
    $region64: #{actor_sac_forward.1} parent=1 // pred_region
      _
    $region65: #{actor_sac_forward.1} parent=1 // pred_fallthru
      _
    %554 = vsyncpa [#allocation3], 1
    %555 = vsyncpa [#allocation5], 1

</llo_original>
